<compile_context>
chip_gen: v6e
topology: v6e:2x2x1
jax: 0.10.0
libtpu: 0.0.40
codegen_flags: <defaults>
</compile_context>

<pallas_src>
import jax
import jax.numpy as jnp
from jax.experimental import pallas as pl
from jax.experimental.pallas import tpu as pltpu

LANES = 512            # lane-dense last dim (multiple of 128) -> long contiguous DMAs
MAX_TILE_ROWS = 2048   # 2048 x 512 f32 = 4 MiB per block buffer
MIN_PALLAS_ROWS = 16   # below this (< 8192 elements) use the fused-XLA fallback


def scale_shift_kernel(params_ref, x_ref, o_ref):
    # params_ref lives in SMEM (scalar prefetch): [w, b].
    # y = w * x + b over a lane-dense (tile_rows, 512) block — pure VPU.
    w = params_ref[0]
    b = params_ref[1]
    o_ref[...] = (x_ref[...].astype(jnp.float32) * w + b).astype(o_ref.dtype)


def linear_forward(x, w, b):
    """x: (B, 1), w: (1, 1), b: (1,) -> (B, 1).

    Only valid for in_features == out_features == 1 (the contraction over Fin
    degenerates to a scalar multiply). Guarded below.
    """
    B, Fin = x.shape
    Fout, Fin_w = w.shape
    assert Fin == 1 and Fout == 1 and Fin_w == 1, (
        "This kernel implements the degenerate 1x1 nn.Linear only."
    )

    dtype = x.dtype
    n = B  # total elements (Fin == 1)

    w_s = w.reshape(()).astype(jnp.float32)
    b_s = b.reshape(()).astype(jnp.float32)

    flat = x.reshape(-1)        # contiguous view, no data movement
    rows = n // LANES           # number of complete lane-dense rows

    # Tiny input: pallas launch + layout plumbing dominates; let XLA fuse it.
    if rows < MIN_PALLAS_ROWS:
        y = (flat.astype(jnp.float32) * w_s + b_s).astype(dtype)
        return y.reshape(B, Fout)

    bulk_n = rows * LANES

    # Tile rows: as large as possible (4 MiB blocks) while keeping >= 2 grid
    # steps so both v7x TensorCores stream HBM; multiple of 8 sublanes.
    tile_rows = min(MAX_TILE_ROWS, ((-(-rows // 2) + 7) // 8) * 8)
    grid = (pl.cdiv(rows, tile_rows),)   # last block may be partial (masked)

    # Zero-copy bitcast when n % LANES == 0; otherwise a prefix view of the bulk.
    slab = flat[:bulk_n].reshape(rows, LANES)

    # w and b packed into a tiny SMEM scalar-prefetch array.
    params = jnp.stack([w_s, b_s])

    out_slab = pl.pallas_call(
        scale_shift_kernel,
        out_shape=jax.ShapeDtypeStruct((rows, LANES), dtype),
        grid_spec=pltpu.PrefetchScalarGridSpec(
            num_scalar_prefetch=1,
            grid=grid,
            in_specs=[
                pl.BlockSpec((tile_rows, LANES), lambda i, params: (i, 0)),
            ],
            out_specs=pl.BlockSpec((tile_rows, LANES), lambda i, params: (i, 0)),
        ),
        compiler_params=pltpu.CompilerParams(
            # Row axis is embarrassingly parallel -> shards across the 2 TCs
            # on v7x; harmless on single-TC v5e/v6e.
            dimension_semantics=("parallel",),
            # 4 MiB blocks * (2 in + 2 out buffers) = 16 MiB: above v5e's
            # 16 MiB scoped default, well under every chip's physical VMEM.
            vmem_limit_bytes=48 * 1024 * 1024,
        ),
    )(params, slab)

    if bulk_n == n:
        # Pure bitcast back to the module's (B, 1) layout — no extra copies.
        return out_slab.reshape(B, Fout)

    # Small tail (< 512 elements): plain jnp, then stitch.
    tail = flat[bulk_n:]
    tail_out = (tail.astype(jnp.float32) * w_s + b_s).astype(dtype)
    return jnp.concatenate([out_slab.reshape(-1), tail_out]).reshape(B, Fout)


if __name__ == "__main__":
    key = jax.random.PRNGKey(0)
    k_w, k_b, k_x1, k_x2, k_x3 = jax.random.split(key, 5)

    in_features = 1
    out_features = 1

    # nn.Linear default init: U(-1/sqrt(in_features), 1/sqrt(in_features)) = U(-1, 1).
    w = jax.random.uniform(
        k_w, (out_features, in_features), jnp.float32, minval=-1.0, maxval=1.0
    )
    b = jax.random.uniform(
        k_b, (out_features,), jnp.float32, minval=-1.0, maxval=1.0
    )

    def check(x):
        y = jax.block_until_ready(linear_forward(x, w, b))
        y_ref = x @ w.T + b
        assert y.shape == y_ref.shape
        assert jnp.allclose(y, y_ref, atol=1e-6, rtol=1e-6)

    # 1) Fully zero-copy Pallas path: B % 512 == 0, 2 grid steps, no tail.
    check(jax.random.normal(k_x1, (16384, in_features), jnp.float32))
    # 2) Pallas path with a partial last grid block + small jnp tail.
    check(jax.random.normal(k_x2, (20000, in_features), jnp.float32))
    # 3) Tiny-batch fused-XLA fallback (no kernel launch).
    check(jax.random.normal(k_x3, (1000, in_features), jnp.float32))

    print("KERNEL_OK")
</pallas_src>

<mosaic_0001>
module attributes {stable_mosaic.version = 11 : i64} {
  func.func @scale_shift_kernel(%arg0: i32, %arg1: memref<2xf32, #tpu.memory_space<smem>>, %arg2: memref<16x512xf32, #tpu.memory_space<vmem>>, %arg3: memref<16x512xf32, #tpu.memory_space<vmem>>) attributes {dimension_semantics = [#tpu.dimension_semantics<parallel>], iteration_bounds = array<i64: 2>, scalar_prefetch = 1 : i64, scratch_operands = 0 : i64, tpu.core_type = #tpu.core_type<tc>, window_params = [{transform_indices = @transform_0, window_bounds = array<i64: 16, 512>}, {transform_indices = @transform_1, window_bounds = array<i64: 16, 512>}]} {
    %c0 = arith.constant 0 : index
    %0 = memref.load %arg1[%c0] : memref<2xf32, #tpu.memory_space<smem>>
    %c1 = arith.constant 1 : index
    %1 = memref.load %arg1[%c1] : memref<2xf32, #tpu.memory_space<smem>>
    %c0_0 = arith.constant 0 : index
    %c0_1 = arith.constant 0 : index
    %2 = vector.load %arg2[%c0_0, %c0_1] : memref<16x512xf32, #tpu.memory_space<vmem>>, vector<16x512xf32>
    %3 = vector.broadcast %0 : f32 to vector<16x512xf32>
    %4 = arith.mulf %2, %3 : vector<16x512xf32>
    %5 = vector.broadcast %1 : f32 to vector<16x512xf32>
    %6 = arith.addf %4, %5 : vector<16x512xf32>
    %c0_2 = arith.constant 0 : index
    %c0_3 = arith.constant 0 : index
    %7 = vector.load %arg3[%c0_2, %c0_3] : memref<16x512xf32, #tpu.memory_space<vmem>>, vector<16x512xf32>
    tpu.vector_store %arg3[%c0_2, %c0_3], %6 {strides = array<i32>} : memref<16x512xf32, #tpu.memory_space<vmem>>, vector<16x512xf32>,
    return
  }
  func.func @transform_0(%arg0: i32, %arg1: memref<2xf32, #tpu.memory_space<smem>>) -> (i32, i32) {
    %c0_i32 = arith.constant 0 : i32
    %c0_i32_0 = arith.constant 0 : i32
    return %arg0, %c0_i32 : i32, i32
  }
  func.func @transform_1(%arg0: i32, %arg1: memref<2xf32, #tpu.memory_space<smem>>) -> (i32, i32) {
    %c0_i32 = arith.constant 0 : i32
    %c0_i32_0 = arith.constant 0 : i32
    return %arg0, %c0_i32 : i32, i32
  }
}

</mosaic_0001>

<llo_original>
// kernel: tpu_custom_call.1
$region0: #{tpu_custom_call.1}
  #allocation0 [shape = 'u32[]', space=smem, size = 0x4, offset = 0x4, fixed_abs, tag = 'smem constant byte address 0x4 - core index']
  #allocation1 [shape = 'u32[144,128]{1,0:T(1,128)}', space=vmem, size = 0x12000, scoped, tag = 'internal scratch']
  #allocation2 [shape = 's32[1]{0}', space=sflag, size = 0x4, scoped, tag = 'scoped memory for tpu_custom_call.1']
  #allocation3 [shape = 'u8[512]{0}', space=smem, size = 0x200, scoped, tag = 'prefetched SMEM operand 0']
  %s0 = inlined_call_operand.hbm [shape: f32[2], index: 0, kind: input, shape index: {}]
  %s1 = inlined_call_operand.hbm [shape: f32[32,512], index: 1, kind: input, shape index: {}]
  %s2 = inlined_call_operand.hbm [shape: f32[32,512], index: 2, kind: output, shape index: {}]
  %s3 = sld [smem:[#allocation0]]
  $region41: #{tpu_custom_call.1} parent=0
    _
  %s5 = ssub.s32 1, %s3
  %s6 = scalar_select 0, %s5, %s3
  %8 = dma.hbm_to_smem %s0, 16, [#allocation3], [#allocation2]
  %9 = dma.done [#allocation2], 16
  %10 = sfence
  $region1: #{tpu_custom_call.1} parent=0
    #allocation4 [shape = 'u8[65536]{0}', space=vmem, size = 0x10000, scoped, tag = 'input window, operand 1']
    #allocation5 [shape = 's32[2]{0}', space=sflag, size = 0x8, scoped, tag = 'scoped memory for tpu_custom_call.1']
    #allocation6 [shape = 's32[2]{0}', space=sflag, size = 0x8, scoped, tag = 'scoped memory for tpu_custom_call.1']
    #allocation7 [shape = 'u8[65536]{0}', space=vmem, size = 0x10000, scoped, tag = 'output window, operand 0']
    %11 = vsyncpa [#allocation5], 0
    %s12 = scalar_lea.sflag [#allocation5], 1
    %13 = vsyncpa %s12, 0
    %14 = vsyncpa [#allocation6], 0
    %s15 = scalar_lea.sflag [#allocation6], 1
    %16 = vsyncpa %s15, 0
    loop: start=0, step=1, limit=4
    $region2: #{tpu_custom_call.1} parent=1 // loop_pre_header
      _
    $region3: #{tpu_custom_call.1} parent=1 // loop_header
      %s18 = sphi 0, %s22
      %p19 = scmp.ge.s32.totalorder %s18, 4
      %s28 = sphi 0, %s30
      %s31 = sphi 0, %s28
      %s32 = sphi 0, %s31
      %s48 = sphi 0, %s32
      %s54 = sphi 0, %s56
      %s57 = sphi 0, %s54
      %s58 = sphi 0, %s57
      %s74 = sphi 0, %s58
    $region4: #{tpu_custom_call.1} parent=1 // loop_header_branch
      %21 = sbr.rel (%p19) target = $region8
    $region5: #{tpu_custom_call.1} parent=1 // loop_body
      %s23 = ssub.s32 %s18, 1
      %s24 = ssub.s32 %s18, 2
      %s25 = sadd.s32 %s18, 1
      %s26 = ssub.s32 %s18, %s25
      %p27 = scmp.eq.s32.totalorder %s26, 0
      %s29 = sadd.s32 %s28, 1
      %s30 = scalar_select %p27, %s28, %s29
      %p33 = pneg %p27
      %p34 = scmp.eq.s32.totalorder %s18, 1
      %p35 = por %p33, %p34
      %p36 = scmp.ne.s32.totalorder %s28, %s31
      %p37 = scmp.eq.s32.totalorder %s18, 0
      %p38 = por %p36, %p37
      %p39 = scmp.ne.s32.totalorder %s28, %s31
      %p40 = scmp.eq.s32.totalorder %s23, 1
      %p41 = por %p39, %p40
      %p42 = scmp.ne.s32.totalorder %s31, %s32
      %p43 = scmp.eq.s32.totalorder %s23, 0
      %p44 = por %p42, %p43
      %p45 = scmp.ne.s32.totalorder %s31, %s32
      %p46 = scmp.eq.s32.totalorder %s24, 1
      %p47 = por %p45, %p46
      %p49 = scmp.ne.s32.totalorder %s32, %s48
      %p50 = scmp.eq.s32.totalorder %s24, 0
      %p51 = por %p49, %p50
      %s52 = ssub.s32 %s18, %s25
      %p53 = scmp.eq.s32.totalorder %s52, 0
      %s55 = sadd.s32 %s54, 1
      %s56 = scalar_select %p53, %s54, %s55
      %p59 = pneg %p53
      %p60 = scmp.eq.s32.totalorder %s18, 1
      %p61 = por %p59, %p60
      %p62 = scmp.ne.s32.totalorder %s54, %s57
      %p63 = scmp.eq.s32.totalorder %s18, 0
      %p64 = por %p62, %p63
      %p65 = scmp.ne.s32.totalorder %s54, %s57
      %p66 = scmp.eq.s32.totalorder %s23, 1
      %p67 = por %p65, %p66
      %p68 = scmp.ne.s32.totalorder %s57, %s58
      %p69 = scmp.eq.s32.totalorder %s23, 0
      %p70 = por %p68, %p69
      %p71 = scmp.ne.s32.totalorder %s57, %s58
      %p72 = scmp.eq.s32.totalorder %s24, 1
      %p73 = por %p71, %p72
      %p75 = scmp.ne.s32.totalorder %s58, %s74
      %p76 = scmp.eq.s32.totalorder %s24, 0
      %p77 = por %p75, %p76
      %p78 = scmp.le.s32.totalorder 1, %s18
      %p79 = scmp.lt.s32.totalorder %s18, 3
      %p80 = pnand %p78, %p79
      %p81 = pneg %p80
      // Predicated region
      $region9: #{tpu_custom_call.1} parent=5 // pred_check
        _
      $region10: #{tpu_custom_call.1} parent=5 // pred_check_branch
        %83 = sbr.rel (%p80) target = $region12
      $region11: #{tpu_custom_call.1} parent=5 // pred_region
        %s84 = ssub.s32 %s18, 1
      $region12: #{tpu_custom_call.1} parent=5 // pred_fallthru
        _
      %p85 = scmp.lt.s32.totalorder %s18, 2
      // Predicated region
      $region13: #{tpu_custom_call.1} parent=5 // pred_check
        %p86 = pneg %p85
      $region14: #{tpu_custom_call.1} parent=5 // pred_check_branch
        %88 = sbr.rel (%p86) target = $region16
      $region15: #{tpu_custom_call.1} parent=5 // pred_region
        // Predicated region
        $region17: #{tpu_custom_call.1} parent=15 // pred_check
          %p89 = pneg %p38
        $region18: #{tpu_custom_call.1} parent=15 // pred_check_branch
          %91 = sbr.rel (%p89) target = $region20
        $region19: #{tpu_custom_call.1} parent=15 // pred_region
          %s92 = sand.u32 %s28, 1
          %s93 = scalar_lea.sflag [#allocation5], %s92
          %s94 = sand.u32 %s28, 1
          %s95 = smul.addr %s94, 64
          %s96 = scalar_lea.vmem [#allocation4], %s95
          %s97 = smul.u32 2, %s18
          %s99 = ssub.s32 1024, 1024
          %100 = vsyncadd %s93, %s99
          %s101 = smul.addr %s97, 4
          %s102 = smul.addr %s101, 128
          %s103 = scalar_lea.hbm %s1, %s102
          %s104 = sshll.u32 %s96, 4
          %s105 = int_to_ptr.vmem [resolvable:$true] %s104
          %110 = dma.hbm_to_vmem [thread:$0]  %s103, 1024, %s105, %s93, 512, 512, 32
        $region20: #{tpu_custom_call.1} parent=15 // pred_fallthru
          _
      $region16: #{tpu_custom_call.1} parent=5 // pred_fallthru
        _
      %p111 = scmp.le.s32.totalorder 1, %s18
      %p112 = scmp.lt.s32.totalorder %s18, 3
      %p113 = pnand %p111, %p112
      %p114 = pneg %p113
      // Predicated region
      $region21: #{tpu_custom_call.1} parent=5 // pred_check
        _
      $region22: #{tpu_custom_call.1} parent=5 // pred_check_branch
        %116 = sbr.rel (%p113) target = $region24
      $region23: #{tpu_custom_call.1} parent=5 // pred_region
        %s117 = ssub.s32 %s18, 1
        %s118 = sand.u32 %s31, 1
        %s119 = scalar_lea.sflag [#allocation5], %s118
        %s120 = sand.u32 %s31, 1
        %s121 = smul.addr %s120, 64
        %s122 = scalar_lea.vmem [#allocation4], %s121
        // Predicated region
        $region25: #{tpu_custom_call.1} parent=23 // pred_check
          %p123 = pneg %p44
        $region26: #{tpu_custom_call.1} parent=23 // pred_check_branch
          %125 = sbr.rel (%p123) target = $region28
        $region27: #{tpu_custom_call.1} parent=23 // pred_region
          %126 = dma.done %s119, 1024
        $region28: #{tpu_custom_call.1} parent=23 // pred_fallthru
          _
        %s127 = sand.u32 %s31, 1
        %s128 = scalar_lea.sflag [#allocation5], %s127
        %s129 = sand.u32 %s31, 1
        %s130 = smul.addr %s129, 64
        %s131 = scalar_lea.vmem [#allocation4], %s130
        %p132 = pneg %p44
        %p133 = pneg %p41
        %p134 = pneg %p70
        %p135 = pneg %p67
        %s136 = sand.u32 %s57, 1
        %s137 = scalar_lea.sflag [#allocation6], %s136
        %s138 = sand.u32 %s57, 1
        %s139 = smul.addr %s138, 64
        %s140 = scalar_lea.vmem [#allocation7], %s139
        %s141 = smul.u32 2, %s23
        %s142 = smul.u32 2, %s23
        %s143 = sld [smem:[#allocation3]]
        %s144 = sld [smem:[#allocation3 + $0x1]]
        %v145 = vld [vmem:[%s122] sm:$0xff]
        %v146 = vld [vmem:[%s122 + $0x8] sm:$0xff]
        %v147 = vld [vmem:[%s122 + $0x10] sm:$0xff]
        %v148 = vld [vmem:[%s122 + $0x18] sm:$0xff]
        %v149 = vld [vmem:[%s122 + $0x20] sm:$0xff]
        %v150 = vld [vmem:[%s122 + $0x28] sm:$0xff]
        %v151 = vld [vmem:[%s122 + $0x30] sm:$0xff]
        %v152 = vld [vmem:[%s122 + $0x38] sm:$0xff]
        %v153 = vstv %s143
        %v154 = vmul.f32 %v145, %v153
        %v155 = vmul.f32 %v146, %v153
        %v156 = vmul.f32 %v147, %v153
        %v157 = vmul.f32 %v148, %v153
        %v158 = vmul.f32 %v149, %v153
        %v159 = vmul.f32 %v150, %v153
        %v160 = vmul.f32 %v151, %v153
        %v161 = vmul.f32 %v152, %v153
        %v162 = vstv %s144
        %v163 = vadd.f32 %v154, %v162
        %v164 = vadd.f32 %v155, %v162
        %v165 = vadd.f32 %v156, %v162
        %v166 = vadd.f32 %v157, %v162
        %v167 = vadd.f32 %v158, %v162
        %v168 = vadd.f32 %v159, %v162
        %v169 = vadd.f32 %v160, %v162
        %v170 = vadd.f32 %v161, %v162
        %171 = vst [vmem:[%s140] sm:$0xff] %v163
        %172 = vst [vmem:[%s140 + $0x8] sm:$0xff] %v164
        %173 = vst [vmem:[%s140 + $0x10] sm:$0xff] %v165
        %174 = vst [vmem:[%s140 + $0x18] sm:$0xff] %v166
        %175 = vst [vmem:[%s140 + $0x20] sm:$0xff] %v167
        %176 = vst [vmem:[%s140 + $0x28] sm:$0xff] %v168
        %177 = vst [vmem:[%s140 + $0x30] sm:$0xff] %v169
        %178 = vst [vmem:[%s140 + $0x38] sm:$0xff] %v170
        %s179 = sand.u32 %s57, 1
        %s180 = scalar_lea.sflag [#allocation6], %s179
        %s181 = sand.u32 %s57, 1
        %s182 = smul.addr %s181, 64
        %s183 = scalar_lea.vmem [#allocation7], %s182
        // Predicated region
        $region29: #{tpu_custom_call.1} parent=23 // pred_check
          %p184 = pneg %p67
        $region30: #{tpu_custom_call.1} parent=23 // pred_check_branch
          %186 = sbr.rel (%p184) target = $region32
        $region31: #{tpu_custom_call.1} parent=23 // pred_region
          %s187 = smul.u32 2, %s23
          %s189 = ssub.s32 1024, 1024
          %190 = vsyncadd %s180, %s189
          %s191 = smul.addr %s187, 4
          %s192 = smul.addr %s191, 128
          %s193 = scalar_lea.hbm %s2, %s192
          %s194 = sshll.u32 %s183, 4
          %s195 = int_to_ptr.vmem [resolvable:$true] %s194
          %200 = dma.vmem_to_hbm [thread:$0]  %s195, 1024, %s193, %s180, 512, 512, 32
        $region32: #{tpu_custom_call.1} parent=23 // pred_fallthru
          _
      $region24: #{tpu_custom_call.1} parent=5 // pred_fallthru
        _
      %p201 = scmp.le.s32.totalorder 2, %s18
      // Predicated region
      $region33: #{tpu_custom_call.1} parent=5 // pred_check
        %p202 = pneg %p201
      $region34: #{tpu_custom_call.1} parent=5 // pred_check_branch
        %204 = sbr.rel (%p202) target = $region36
      $region35: #{tpu_custom_call.1} parent=5 // pred_region
        %s205 = ssub.s32 %s18, 2
        // Predicated region
        $region37: #{tpu_custom_call.1} parent=35 // pred_check
          %p206 = pneg %p73
        $region38: #{tpu_custom_call.1} parent=35 // pred_check_branch
          %208 = sbr.rel (%p206) target = $region40
        $region39: #{tpu_custom_call.1} parent=35 // pred_region
          %s209 = sand.u32 %s58, 1
          %s210 = scalar_lea.sflag [#allocation6], %s209
          %s211 = sand.u32 %s58, 1
          %s212 = smul.addr %s211, 64
          %s213 = scalar_lea.vmem [#allocation7], %s212
          %214 = dma.done %s210, 1024
        $region40: #{tpu_custom_call.1} parent=35 // pred_fallthru
          _
      $region36: #{tpu_custom_call.1} parent=5 // pred_fallthru
        _
    $region6: #{tpu_custom_call.1} parent=1 // loop_footer
      %s22 = sadd.s32 1, %s18
    $region7: #{tpu_custom_call.1} parent=1 // loop_footer_branch
      %17 = sbr.rel target = $region3
    $region8: #{tpu_custom_call.1} parent=1 // loop_exit
      _
    %215 = vsyncpa [#allocation5], 1
    %s216 = scalar_lea.sflag [#allocation5], 1
    %217 = vsyncpa %s216, 1
    %218 = vsyncpa [#allocation6], 1
    %s219 = scalar_lea.sflag [#allocation6], 1
    %220 = vsyncpa %s219, 1

</llo_original>
